<compile_context>
chip_gen: v6e
topology: v6e:2x2x1
jax: 0.10.0
libtpu: 0.0.40
codegen_flags: <defaults>
</compile_context>

<pallas_src>
import math

import jax
import jax.numpy as jnp
from jax.experimental import pallas as pl
from jax.experimental.pallas import tpu as pltpu


def _svd_bilinear_kernel(in1_ref, in2_ref, lmat_ref, rmat_ref, diag_ref,
                         sel_ref, out_ref):
    """Two MXU matmuls + one VPU elementwise combine + one MXU reduce.

    in1_ref : (tN, I1)    in2_ref : (tN, I2)
    lmat_ref: (I1, O*B)   rmat_ref: (I2, O*B)   diag_ref: (1, O*B)
    sel_ref : (O*B, O)    out_ref : (tN, O)
    """
    a1 = jnp.dot(in1_ref[...], lmat_ref[...],
                 preferred_element_type=jnp.float32)          # (tN, O*B)
    a2 = jnp.dot(in2_ref[...], rmat_ref[...],
                 preferred_element_type=jnp.float32)          # (tN, O*B)
    prod = a1 * diag_ref[...] * a2                            # f32 VPU, (tN, O*B)
    # Sum over the B basis components per output via a block-diag-ones matmul
    # (MXU), yielding a lane-contiguous (tN, O) result written in one store.
    out_ref[...] = jnp.dot(prod, sel_ref[...],
                           preferred_element_type=jnp.float32
                           ).astype(out_ref.dtype)


def svd_bilinear(in1, in2, left_singular, right_singular, diag, *, tile_n=256):
    n, i1 = in1.shape
    _, i2 = in2.shape
    o, _, b = left_singular.shape
    ob = o * b

    # ---- one-time wrapper-side layout plumbing (plain XLA reshapes) --------
    # Lmat[i, o*B+b] = left_singular[o, i, b]
    lmat = jnp.transpose(left_singular, (1, 0, 2)).reshape(i1, ob)
    # Rmat[j, o*B+b] = right_singular[o, b, j]
    rmat = jnp.transpose(right_singular, (2, 0, 1)).reshape(i2, ob)
    # diag_row[0, o*B+b] = diag[o, 0, b]
    drow = diag.reshape(1, ob).astype(jnp.float32)
    # Block-diagonal-ones selector: sums B basis terms per output on the MXU.
    sel = (jnp.arange(ob)[:, None] // b ==
           jnp.arange(o)[None, :]).astype(jnp.float32)

    out_shape = jax.ShapeDtypeStruct((n, o), in1.dtype)

    if n <= tile_n:
        # Whole problem fits in a single VMEM block: no grid, no pipeline
        # prologue/epilogue or per-step overhead.
        return pl.pallas_call(
            _svd_bilinear_kernel,
            out_shape=out_shape,
        )(in1, in2, lmat, rmat, drow, sel)

    # Realistic batch: stream N through the grid; weights stay tiny constant
    # blocks.  Batch axis marked "parallel" (splits across TCs on v7x).
    grid = (pl.cdiv(n, tile_n),)
    return pl.pallas_call(
        _svd_bilinear_kernel,
        out_shape=out_shape,
        grid=grid,
        in_specs=[
            pl.BlockSpec((tile_n, i1), lambda t: (t, 0)),
            pl.BlockSpec((tile_n, i2), lambda t: (t, 0)),
            pl.BlockSpec((i1, ob), lambda t: (0, 0)),
            pl.BlockSpec((i2, ob), lambda t: (0, 0)),
            pl.BlockSpec((1, ob), lambda t: (0, 0)),
            pl.BlockSpec((ob, o), lambda t: (0, 0)),
        ],
        out_specs=pl.BlockSpec((tile_n, o), lambda t: (t, 0)),
        compiler_params=pltpu.CompilerParams(
            dimension_semantics=("parallel",)),
    )(in1, in2, lmat, rmat, drow, sel)


if __name__ == "__main__":
    # Small shapes consistent with the module.
    N, IN1, IN2, OUT, NUM_BASIS = 8, 16, 32, 8, 4

    key = jax.random.PRNGKey(0)
    k1, k2, k3, k4, k5 = jax.random.split(key, 5)

    # Deterministic parameter init mirroring reset_parameter():
    #   xavier_uniform_(gain=1.414) on left/right singular, normal(0, 1/sqrt(B)).
    gain = 1.414
    bound_l = gain * math.sqrt(6.0 / (IN1 * NUM_BASIS + OUT * NUM_BASIS))
    bound_r = gain * math.sqrt(6.0 / (NUM_BASIS * IN2 + OUT * IN2))

    left_singular = jax.random.uniform(
        k1, (OUT, IN1, NUM_BASIS), jnp.float32, -bound_l, bound_l)
    right_singular = jax.random.uniform(
        k2, (OUT, NUM_BASIS, IN2), jnp.float32, -bound_r, bound_r)
    diag = jax.random.normal(
        k3, (OUT, 1, NUM_BASIS), jnp.float32) / math.sqrt(NUM_BASIS)

    in1 = jax.random.normal(k4, (N, IN1), jnp.float32)
    in2 = jax.random.normal(k5, (N, IN2), jnp.float32)

    # Pure-JAX reference.
    usv_ref = jnp.einsum("oib,obj->oij", left_singular * diag, right_singular)

    # --- small-batch (gridless) path ---
    out = jax.block_until_ready(
        svd_bilinear(in1, in2, left_singular, right_singular, diag))
    ref = jnp.einsum("ni,oij,nj->no", in1, usv_ref, in2)
    assert out.shape == (N, OUT), out.shape
    assert jnp.allclose(out, ref, rtol=1e-4, atol=1e-4), (
        f"max abs err {jnp.max(jnp.abs(out - ref))}")

    # --- tiled-batch (grid) path ---
    N_BIG = 512
    kb1, kb2 = jax.random.split(jax.random.PRNGKey(1), 2)
    in1_big = jax.random.normal(kb1, (N_BIG, IN1), jnp.float32)
    in2_big = jax.random.normal(kb2, (N_BIG, IN2), jnp.float32)
    out_big = jax.block_until_ready(
        svd_bilinear(in1_big, in2_big, left_singular, right_singular, diag,
                     tile_n=256))
    ref_big = jnp.einsum("ni,oij,nj->no", in1_big, usv_ref, in2_big)
    assert out_big.shape == (N_BIG, OUT), out_big.shape
    assert jnp.allclose(out_big, ref_big, rtol=1e-4, atol=1e-4), (
        f"max abs err {jnp.max(jnp.abs(out_big - ref_big))}")

    print("KERNEL_OK")
</pallas_src>

<mosaic_0001>
module attributes {stable_mosaic.version = 11 : i64} {
  func.func @_svd_bilinear_kernel(%arg0: memref<8x16xf32, #tpu.memory_space<vmem>>, %arg1: memref<8x32xf32, #tpu.memory_space<vmem>>, %arg2: memref<16x32xf32, #tpu.memory_space<vmem>>, %arg3: memref<32x32xf32, #tpu.memory_space<vmem>>, %arg4: memref<1x32xf32, #tpu.memory_space<vmem>>, %arg5: memref<32x8xf32, #tpu.memory_space<vmem>>, %arg6: memref<8x8xf32, #tpu.memory_space<vmem>>) attributes {dimension_semantics = [], scalar_prefetch = 0 : i64, scratch_operands = 0 : i64, tpu.core_type = #tpu.core_type<tc>} {
    %c0 = arith.constant 0 : index
    %c0_0 = arith.constant 0 : index
    %0 = vector.load %arg0[%c0, %c0_0] : memref<8x16xf32, #tpu.memory_space<vmem>>, vector<8x16xf32>
    %c0_1 = arith.constant 0 : index
    %c0_2 = arith.constant 0 : index
    %1 = vector.load %arg2[%c0_1, %c0_2] : memref<16x32xf32, #tpu.memory_space<vmem>>, vector<16x32xf32>
    %cst = arith.constant dense<0.000000e+00> : vector<8x32xf32>
    %2 = tpu.matmul %0, %1, %cst {dimension_numbers = #tpu.dot_dimension_numbers<[1], [0], [0], [1], [0, 0, 1, 1], [], []>} : vector<8x16xf32>, vector<16x32xf32>, vector<8x32xf32> -> vector<8x32xf32>
    %c0_3 = arith.constant 0 : index
    %c0_4 = arith.constant 0 : index
    %3 = vector.load %arg1[%c0_3, %c0_4] : memref<8x32xf32, #tpu.memory_space<vmem>>, vector<8x32xf32>
    %c0_5 = arith.constant 0 : index
    %c0_6 = arith.constant 0 : index
    %4 = vector.load %arg3[%c0_5, %c0_6] : memref<32x32xf32, #tpu.memory_space<vmem>>, vector<32x32xf32>
    %cst_7 = arith.constant dense<0.000000e+00> : vector<8x32xf32>
    %5 = tpu.matmul %3, %4, %cst_7 {dimension_numbers = #tpu.dot_dimension_numbers<[1], [0], [0], [1], [0, 0, 1, 1], [], []>} : vector<8x32xf32>, vector<32x32xf32>, vector<8x32xf32> -> vector<8x32xf32>
    %c0_8 = arith.constant 0 : index
    %c0_9 = arith.constant 0 : index
    %6 = vector.load %arg4[%c0_8, %c0_9] : memref<1x32xf32, #tpu.memory_space<vmem>>, vector<1x32xf32>
    %7 = vector.broadcast %6 : vector<1x32xf32> to vector<8x32xf32>
    %8 = arith.mulf %2, %7 : vector<8x32xf32>
    %9 = arith.mulf %8, %5 : vector<8x32xf32>
    %c0_10 = arith.constant 0 : index
    %c0_11 = arith.constant 0 : index
    %10 = vector.load %arg5[%c0_10, %c0_11] : memref<32x8xf32, #tpu.memory_space<vmem>>, vector<32x8xf32>
    %cst_12 = arith.constant dense<0.000000e+00> : vector<8x8xf32>
    %11 = tpu.matmul %9, %10, %cst_12 {dimension_numbers = #tpu.dot_dimension_numbers<[1], [0], [0], [1], [0, 0, 1, 1], [], []>} : vector<8x32xf32>, vector<32x8xf32>, vector<8x8xf32> -> vector<8x8xf32>
    %c0_13 = arith.constant 0 : index
    %c0_14 = arith.constant 0 : index
    %12 = vector.load %arg6[%c0_13, %c0_14] : memref<8x8xf32, #tpu.memory_space<vmem>>, vector<8x8xf32>
    tpu.vector_store %arg6[%c0_13, %c0_14], %11 {strides = array<i32>} : memref<8x8xf32, #tpu.memory_space<vmem>>, vector<8x8xf32>,
    return
  }
}

</mosaic_0001>

<llo_original>
// kernel: tpu_custom_call.1
$region0: #{tpu_custom_call.1}
  #allocation0 [shape = 'u32[]', space=smem, size = 0x4, offset = 0x4, fixed_abs, tag = 'smem constant byte address 0x4 - core index']
  #allocation1 [shape = 'u32[144,128]{1,0:T(1,128)}', space=vmem, size = 0x12000, scoped, tag = 'internal scratch']
  %s0 = inlined_call_operand.vmem [shape: f32[8,16], index: 0, kind: input, shape index: {}]
  %s1 = inlined_call_operand.hbm [shape: f32[8,32], index: 1, kind: input, shape index: {}]
  %s2 = inlined_call_operand.hbm [shape: f32[16,32], index: 2, kind: input, shape index: {}]
  %s3 = inlined_call_operand.vmem [shape: f32[32,32], index: 3, kind: input, shape index: {}]
  %s4 = inlined_call_operand.vmem [shape: f32[1,32], index: 4, kind: input, shape index: {}]
  %s5 = inlined_call_operand.vmem [shape: f32[32,8], index: 5, kind: input, shape index: {}]
  %s6 = inlined_call_operand.hbm [shape: f32[8,8], index: 6, kind: output, shape index: {}]
  %s7 = sld [smem:[#allocation0]]
  $region42: #{tpu_custom_call.1} parent=0
    _
  %s9 = ssub.s32 1, %s7
  %s10 = scalar_select 0, %s9, %s7
  $region1: #{tpu_custom_call.1} parent=0
    #allocation2 [shape = 'u8[4096]{0}', space=vmem, size = 0x1000, scoped, tag = 'input window, operand 1, single buffered']
    #allocation3 [shape = 's32[1]{0}', space=sflag, size = 0x4, scoped, tag = 'scoped memory for tpu_custom_call.1']
    #allocation4 [shape = 's32[1]{0}', space=sflag, size = 0x4, scoped, tag = 'scoped memory for tpu_custom_call.1']
    #allocation5 [shape = 'u8[8192]{0}', space=vmem, size = 0x2000, scoped, tag = 'input window, operand 2, single buffered']
    #allocation6 [shape = 's32[1]{0}', space=sflag, size = 0x4, scoped, tag = 'scoped memory for tpu_custom_call.1']
    #allocation7 [shape = 'u8[4096]{0}', space=vmem, size = 0x1000, scoped, tag = 'output window, operand 0, single buffered']
    %11 = vsyncpa [#allocation3], 0
    %12 = vsyncpa [#allocation6], 0
    %13 = vsyncpa [#allocation4], 0
    // Predicated region
    $region2: #{tpu_custom_call.1} parent=1 // pred_check
      _
    $region3: #{tpu_custom_call.1} parent=1 // pred_check_branch
      %15 = sbr.rel (0) target = $region5
    $region4: #{tpu_custom_call.1} parent=1 // pred_region
      _
    $region5: #{tpu_custom_call.1} parent=1 // pred_fallthru
      _
    // Predicated region
    $region6: #{tpu_custom_call.1} parent=1 // pred_check
      _
    $region7: #{tpu_custom_call.1} parent=1 // pred_check_branch
      %17 = sbr.rel (0) target = $region9
    $region8: #{tpu_custom_call.1} parent=1 // pred_region
      %s19 = ssub.s32 128, 128
      %20 = vsyncadd [#allocation3], %s19
      %s22 = sshll.u32 [#allocation2], 4
      %s23 = int_to_ptr.vmem [resolvable:$true] %s22
      %25 = dma.hbm_to_vmem [thread:$0]  %s1, 128, %s23, [#allocation3]
    $region9: #{tpu_custom_call.1} parent=1 // pred_fallthru
      _
    // Predicated region
    $region10: #{tpu_custom_call.1} parent=1 // pred_check
      _
    $region11: #{tpu_custom_call.1} parent=1 // pred_check_branch
      %27 = sbr.rel (0) target = $region13
    $region12: #{tpu_custom_call.1} parent=1 // pred_region
      %s29 = ssub.s32 256, 256
      %30 = vsyncadd [#allocation6], %s29
      %s31 = sshll.u32 [#allocation5], 4
      %s32 = int_to_ptr.vmem [resolvable:$true] %s31
      %37 = dma.hbm_to_vmem [thread:$0]  %s2, 256, %s32, [#allocation6], 128, 128, 8
    $region13: #{tpu_custom_call.1} parent=1 // pred_fallthru
      _
    // Predicated region
    $region14: #{tpu_custom_call.1} parent=1 // pred_check
      _
    $region15: #{tpu_custom_call.1} parent=1 // pred_check_branch
      %39 = sbr.rel (0) target = $region17
    $region16: #{tpu_custom_call.1} parent=1 // pred_region
      _
    $region17: #{tpu_custom_call.1} parent=1 // pred_fallthru
      _
    // Predicated region
    $region18: #{tpu_custom_call.1} parent=1 // pred_check
      _
    $region19: #{tpu_custom_call.1} parent=1 // pred_check_branch
      %41 = sbr.rel (0) target = $region21
    $region20: #{tpu_custom_call.1} parent=1 // pred_region
      _
    $region21: #{tpu_custom_call.1} parent=1 // pred_fallthru
      _
    // Predicated region
    $region22: #{tpu_custom_call.1} parent=1 // pred_check
      _
    $region23: #{tpu_custom_call.1} parent=1 // pred_check_branch
      %43 = sbr.rel (0) target = $region25
    $region24: #{tpu_custom_call.1} parent=1 // pred_region
      _
    $region25: #{tpu_custom_call.1} parent=1 // pred_fallthru
      _
    // Predicated region
    $region26: #{tpu_custom_call.1} parent=1 // pred_check
      _
    $region27: #{tpu_custom_call.1} parent=1 // pred_check_branch
      %45 = sbr.rel (0) target = $region29
    $region28: #{tpu_custom_call.1} parent=1 // pred_region
      %46 = dma.done [#allocation3], 128
    $region29: #{tpu_custom_call.1} parent=1 // pred_fallthru
      _
    // Predicated region
    $region30: #{tpu_custom_call.1} parent=1 // pred_check
      _
    $region31: #{tpu_custom_call.1} parent=1 // pred_check_branch
      %48 = sbr.rel (0) target = $region33
    $region32: #{tpu_custom_call.1} parent=1 // pred_region
      %49 = dma.done [#allocation6], 256
    $region33: #{tpu_custom_call.1} parent=1 // pred_fallthru
      _
    %v50 = vld [vmem:[%s0] sm:$0xff]
    %v51 = vld [vmem:[#allocation5] sm:$0xff]
    %v52 = vld [vmem:[#allocation5 + $0x8] sm:$0xff]
    %vm53 = vcmask 130048
    %v55 = vsel %vm53, %v50, 0
    %57 = vmatprep.subr.mxu0 0.0
    %58 = vmatpush1.msra.mxu0 0.0
    %59 = vmatprep.subr.mxu0 0.0
    %60 = vmatpush1.msra.mxu0 0.0
    %61 = vmatprep.subr.mxu0 0.0
    %62 = vmatpush1.msra.mxu0 0.0
    %63 = vmatprep.subr.mxu0 0.0
    %64 = vmatpush1.msra.mxu0 0.0
    %65 = vmatprep.subr.mxu0 0.0
    %66 = vmatpush1.msra.mxu0 0.0
    %67 = vmatprep.subr.mxu0 0.0
    %68 = vmatpush1.msra.mxu0 0.0
    %69 = vmatprep.subr.mxu0 0.0
    %70 = vmatpush1.msra.mxu0 0.0
    %71 = vmatprep.subr.mxu0 0.0
    %72 = vmatpush1.msra.mxu0 0.0
    %73 = vmatprep.subr.mxu0 0.0
    %74 = vmatpush1.msra.mxu0 0.0
    %75 = vmatprep.subr.mxu0 0.0
    %76 = vmatpush1.msra.mxu0 0.0
    %77 = vmatprep.subr.mxu0 0.0
    %78 = vmatpush1.msra.mxu0 0.0
    %79 = vmatprep.subr.mxu0 0.0
    %80 = vmatpush1.msra.mxu0 0.0
    %81 = vmatprep.subr.mxu0 0.0
    %82 = vmatpush1.msra.mxu0 0.0
    %83 = vmatprep.subr.mxu0 0.0
    %84 = vmatpush1.msra.mxu0 0.0
    %85 = vmatprep.subr.mxu0 0.0
    %86 = vmatpush1.msra.mxu0 %v52
    %87 = vmatprep.subr.mxu0 0.0
    %88 = vmatpush1.msra.mxu0 %v51
    %89 = vmatprep.subr.mxu0 0.0
    %90 = vmatpush2.msra.mxu0 0.0
    %91 = vmatprep.subr.mxu0 0.0
    %92 = vmatpush2.msra.mxu0 0.0
    %93 = vmatprep.subr.mxu0 0.0
    %94 = vmatpush2.msra.mxu0 0.0
    %95 = vmatprep.subr.mxu0 0.0
    %96 = vmatpush2.msra.mxu0 0.0
    %97 = vmatprep.subr.mxu0 0.0
    %98 = vmatpush2.msra.mxu0 0.0
    %99 = vmatprep.subr.mxu0 0.0
    %100 = vmatpush2.msra.mxu0 0.0
    %101 = vmatprep.subr.mxu0 0.0
    %102 = vmatpush2.msra.mxu0 0.0
    %103 = vmatprep.subr.mxu0 0.0
    %104 = vmatpush2.msra.mxu0 0.0
    %105 = vmatprep.subr.mxu0 0.0
    %106 = vmatpush2.msra.mxu0 0.0
    %107 = vmatprep.subr.mxu0 0.0
    %108 = vmatpush2.msra.mxu0 0.0
    %109 = vmatprep.subr.mxu0 0.0
    %110 = vmatpush2.msra.mxu0 0.0
    %111 = vmatprep.subr.mxu0 0.0
    %112 = vmatpush2.msra.mxu0 0.0
    %113 = vmatprep.subr.mxu0 0.0
    %114 = vmatpush2.msra.mxu0 0.0
    %115 = vmatprep.subr.mxu0 0.0
    %116 = vmatpush2.msra.mxu0 0.0
    %117 = vmatprep.subr.mxu0 0.0
    %118 = vmatpush2.msra.mxu0 0.0
    %119 = vmatprep.subr.mxu0 0.0
    %120 = vmatpush2.msra.mxu0 0.0
    %121 = vmatprep.mubr.f32.mxu0 0.0
    %122 = vmatmul.mubr.f32.gmra.mxu0 %v55
    %v123 = vpop.f32.mrf.mxu0
    %v124 = vadd.f32 0.0, %v123
    %v125 = vpop.f32.mrf.mxu0
    %126 = vdwg.mxu0
    %v127 = vld [vmem:[#allocation2] sm:$0xff]
    %v128 = vld [vmem:[%s3] sm:$0xff]
    %v129 = vld [vmem:[%s3 + $0x8] sm:$0xff]
    %v130 = vld [vmem:[%s3 + $0x10] sm:$0xff]
    %v131 = vld [vmem:[%s3 + $0x18] sm:$0xff]
    %vm132 = vcmask 261120
    %v134 = vsel %vm132, %v127, 0
    %136 = vmatprep.subr.mxu0 0.0
    %137 = vmatpush1.msra.mxu0 0.0
    %138 = vmatprep.subr.mxu0 0.0
    %139 = vmatpush1.msra.mxu0 0.0
    %140 = vmatprep.subr.mxu0 0.0
    %141 = vmatpush1.msra.mxu0 0.0
    %142 = vmatprep.subr.mxu0 0.0
    %143 = vmatpush1.msra.mxu0 0.0
    %144 = vmatprep.subr.mxu0 0.0
    %145 = vmatpush1.msra.mxu0 0.0
    %146 = vmatprep.subr.mxu0 0.0
    %147 = vmatpush1.msra.mxu0 0.0
    %148 = vmatprep.subr.mxu0 0.0
    %149 = vmatpush1.msra.mxu0 0.0
    %150 = vmatprep.subr.mxu0 0.0
    %151 = vmatpush1.msra.mxu0 0.0
    %152 = vmatprep.subr.mxu0 0.0
    %153 = vmatpush1.msra.mxu0 0.0
    %154 = vmatprep.subr.mxu0 0.0
    %155 = vmatpush1.msra.mxu0 0.0
    %156 = vmatprep.subr.mxu0 0.0
    %157 = vmatpush1.msra.mxu0 0.0
    %158 = vmatprep.subr.mxu0 0.0
    %159 = vmatpush1.msra.mxu0 0.0
    %160 = vmatprep.subr.mxu0 0.0
    %161 = vmatpush1.msra.mxu0 %v131
    %162 = vmatprep.subr.mxu0 0.0
    %163 = vmatpush1.msra.mxu0 %v130
    %164 = vmatprep.subr.mxu0 0.0
    %165 = vmatpush1.msra.mxu0 %v129
    %166 = vmatprep.subr.mxu0 0.0
    %167 = vmatpush1.msra.mxu0 %v128
    %168 = vmatprep.subr.mxu0 0.0
    %169 = vmatpush2.msra.mxu0 0.0
    %170 = vmatprep.subr.mxu0 0.0
    %171 = vmatpush2.msra.mxu0 0.0
    %172 = vmatprep.subr.mxu0 0.0
    %173 = vmatpush2.msra.mxu0 0.0
    %174 = vmatprep.subr.mxu0 0.0
    %175 = vmatpush2.msra.mxu0 0.0
    %176 = vmatprep.subr.mxu0 0.0
    %177 = vmatpush2.msra.mxu0 0.0
    %178 = vmatprep.subr.mxu0 0.0
    %179 = vmatpush2.msra.mxu0 0.0
    %180 = vmatprep.subr.mxu0 0.0
    %181 = vmatpush2.msra.mxu0 0.0
    %182 = vmatprep.subr.mxu0 0.0
    %183 = vmatpush2.msra.mxu0 0.0
    %184 = vmatprep.subr.mxu0 0.0
    %185 = vmatpush2.msra.mxu0 0.0
    %186 = vmatprep.subr.mxu0 0.0
    %187 = vmatpush2.msra.mxu0 0.0
    %188 = vmatprep.subr.mxu0 0.0
    %189 = vmatpush2.msra.mxu0 0.0
    %190 = vmatprep.subr.mxu0 0.0
    %191 = vmatpush2.msra.mxu0 0.0
    %192 = vmatprep.subr.mxu0 0.0
    %193 = vmatpush2.msra.mxu0 0.0
    %194 = vmatprep.subr.mxu0 0.0
    %195 = vmatpush2.msra.mxu0 0.0
    %196 = vmatprep.subr.mxu0 0.0
    %197 = vmatpush2.msra.mxu0 0.0
    %198 = vmatprep.subr.mxu0 0.0
    %199 = vmatpush2.msra.mxu0 0.0
    %200 = vmatprep.mubr.f32.mxu0 0.0
    %201 = vmatmul.mubr.f32.gmra.mxu0 %v134
    %v202 = vpop.f32.mrf.mxu0
    %v203 = vadd.f32 0.0, %v202
    %v204 = vpop.f32.mrf.mxu0
    %205 = vdwg.mxu0
    %v206 = vld [vmem:[%s4] sm:$0x1]
    %v208 = vlaneseq
    %v209 = vshrl.u32 %v208, 7
    %v210 = vsub.s32 0, %v209
    %v211 = vrot.slane %v206, %v210
    %v213 = vmul.f32 %v124, %v211
    %v214 = vmul.f32 %v213, %v203
    %v215 = vld [vmem:[%s5] sm:$0xff]
    %v216 = vld [vmem:[%s5 + $0x8] sm:$0xff]
    %v217 = vld [vmem:[%s5 + $0x10] sm:$0xff]
    %v218 = vld [vmem:[%s5 + $0x18] sm:$0xff]
    %v220 = vsel %vm132, %v214, 0
    %222 = vmatprep.subr.mxu0 0.0
    %223 = vmatpush1.msra.mxu0 0.0
    %224 = vmatprep.subr.mxu0 0.0
    %225 = vmatpush1.msra.mxu0 0.0
    %226 = vmatprep.subr.mxu0 0.0
    %227 = vmatpush1.msra.mxu0 0.0
    %228 = vmatprep.subr.mxu0 0.0
    %229 = vmatpush1.msra.mxu0 0.0
    %230 = vmatprep.subr.mxu0 0.0
    %231 = vmatpush1.msra.mxu0 0.0
    %232 = vmatprep.subr.mxu0 0.0
    %233 = vmatpush1.msra.mxu0 0.0
    %234 = vmatprep.subr.mxu0 0.0
    %235 = vmatpush1.msra.mxu0 0.0
    %236 = vmatprep.subr.mxu0 0.0
    %237 = vmatpush1.msra.mxu0 0.0
    %238 = vmatprep.subr.mxu0 0.0
    %239 = vmatpush1.msra.mxu0 0.0
    %240 = vmatprep.subr.mxu0 0.0
    %241 = vmatpush1.msra.mxu0 0.0
    %242 = vmatprep.subr.mxu0 0.0
    %243 = vmatpush1.msra.mxu0 0.0
    %244 = vmatprep.subr.mxu0 0.0
    %245 = vmatpush1.msra.mxu0 0.0
    %246 = vmatprep.subr.mxu0 0.0
    %247 = vmatpush1.msra.mxu0 %v218
    %248 = vmatprep.subr.mxu0 0.0
    %249 = vmatpush1.msra.mxu0 %v217
    %250 = vmatprep.subr.mxu0 0.0
    %251 = vmatpush1.msra.mxu0 %v216
    %252 = vmatprep.subr.mxu0 0.0
    %253 = vmatpush1.msra.mxu0 %v215
    %254 = vmatprep.subr.mxu0 0.0
    %255 = vmatpush2.msra.mxu0 0.0
    %256 = vmatprep.subr.mxu0 0.0
    %257 = vmatpush2.msra.mxu0 0.0
    %258 = vmatprep.subr.mxu0 0.0
    %259 = vmatpush2.msra.mxu0 0.0
    %260 = vmatprep.subr.mxu0 0.0
    %261 = vmatpush2.msra.mxu0 0.0
    %262 = vmatprep.subr.mxu0 0.0
    %263 = vmatpush2.msra.mxu0 0.0
    %264 = vmatprep.subr.mxu0 0.0
    %265 = vmatpush2.msra.mxu0 0.0
    %266 = vmatprep.subr.mxu0 0.0
    %267 = vmatpush2.msra.mxu0 0.0
    %268 = vmatprep.subr.mxu0 0.0
    %269 = vmatpush2.msra.mxu0 0.0
    %270 = vmatprep.subr.mxu0 0.0
    %271 = vmatpush2.msra.mxu0 0.0
    %272 = vmatprep.subr.mxu0 0.0
    %273 = vmatpush2.msra.mxu0 0.0
    %274 = vmatprep.subr.mxu0 0.0
    %275 = vmatpush2.msra.mxu0 0.0
    %276 = vmatprep.subr.mxu0 0.0
    %277 = vmatpush2.msra.mxu0 0.0
    %278 = vmatprep.subr.mxu0 0.0
    %279 = vmatpush2.msra.mxu0 0.0
    %280 = vmatprep.subr.mxu0 0.0
    %281 = vmatpush2.msra.mxu0 0.0
    %282 = vmatprep.subr.mxu0 0.0
    %283 = vmatpush2.msra.mxu0 0.0
    %284 = vmatprep.subr.mxu0 0.0
    %285 = vmatpush2.msra.mxu0 0.0
    %286 = vmatprep.mubr.f32.mxu0 0.0
    %287 = vmatmul.mubr.f32.gmra.mxu0 %v220
    %v288 = vpop.f32.mrf.mxu0
    %v289 = vadd.f32 0.0, %v288
    %v290 = vpop.f32.mrf.mxu0
    %291 = vdwg.mxu0
    %vm292 = vcmask 64512
    %293 = vst.msk [vmem:[#allocation7] sm:$0xff] %vm292, %v289
    // Predicated region
    $region34: #{tpu_custom_call.1} parent=1 // pred_check
      _
    $region35: #{tpu_custom_call.1} parent=1 // pred_check_branch
      %295 = sbr.rel (0) target = $region37
    $region36: #{tpu_custom_call.1} parent=1 // pred_region
      %s297 = ssub.s32 128, 128
      %298 = vsyncadd [#allocation4], %s297
      %s300 = sshll.u32 [#allocation7], 4
      %s301 = int_to_ptr.vmem [resolvable:$true] %s300
      %303 = dma.vmem_to_hbm [thread:$0]  %s301, 128, %s6, [#allocation4]
    $region37: #{tpu_custom_call.1} parent=1 // pred_fallthru
      _
    // Predicated region
    $region38: #{tpu_custom_call.1} parent=1 // pred_check
      _
    $region39: #{tpu_custom_call.1} parent=1 // pred_check_branch
      %305 = sbr.rel (0) target = $region41
    $region40: #{tpu_custom_call.1} parent=1 // pred_region
      %306 = dma.done [#allocation4], 128
    $region41: #{tpu_custom_call.1} parent=1 // pred_fallthru
      _
    %307 = vsyncpa [#allocation3], 1
    %308 = vsyncpa [#allocation6], 1
    %309 = vsyncpa [#allocation4], 1

</llo_original>
